<compile_context>
chip_gen: v7x
topology: tpu7x:2x2x1
jax: 0.10.0
libtpu: 0.0.40
codegen_flags: <defaults>
</compile_context>

<pallas_src>
import functools

import numpy as np

import jax
import jax.numpy as jnp
from jax.experimental import pallas as pl
from jax.experimental.pallas import tpu as pltpu


def _sepconv_kernel(x_ref, dw_ref, pw_ref, cmask_ref, o_ref, xz_ref, *,
                    K, dilation, padding, W, cin, cout, nb):
    """Fused depthwise KxK + pointwise 1x1 conv, flat-spatial (lane-dense) layout.

    x_ref    : (nb, Cin, L)     L = H*W, flattened spatial on the lane axis
    dw_ref   : (Cin, K*K)       depthwise taps (f32, VMEM)
    pw_ref   : (Cout, Cin)      pointwise weights (f32, VMEM)
    cmask_ref: (K, L)           per-kw 0/1 column-validity masks (f32, VMEM)
    o_ref    : (nb, Cout, L)    output, same flat layout
    xz_ref   : (Cin, L + ext)   VMEM scratch: zero-extended flat input rows
    """
    L = o_ref.shape[2]
    ext = dilation * (K - 1) * (W + 1)      # total zero extension (rows halo)
    pre = padding * (W + 1)                 # leading zeros (top/left padding)

    dw = dw_ref[...]                        # (Cin, K*K)
    pw = pw_ref[...]                        # (Cout, Cin)
    cmask = cmask_ref[...]                  # (K, L)

    # Zero the scratch every grid step (scratch is per-core; do not gate on
    # program_id -- on v7x different cores handle different grid steps).
    xz_ref[...] = jnp.zeros(xz_ref.shape, jnp.float32)

    for n in range(nb):
        # Place the image so every tap is an in-bounds static lane shift; reads
        # that fall on out-of-image *rows* land in the zero strips, reads on
        # out-of-image *columns* are zeroed by cmask below.
        xz_ref[:, pre:pre + L] = x_ref[n].astype(jnp.float32)

        # Depthwise KxK: one broadcast multiply-add per tap over all Cin rows.
        acc = jnp.zeros((cin, L), jnp.float32)
        for kh in range(K):
            for kw in range(K):
                t = kh * K + kw
                off = (kh * W + kw) * dilation          # static lane shift >= 0
                patch = xz_ref[:, off:off + L]          # (Cin, L)
                patch = patch * cmask[kw:kw + 1, :]     # zero-pad columns
                acc = acc + dw[:, t:t + 1] * patch

        # Pointwise 1x1 on the VPU: scatter each depthwise channel into every
        # output channel; one dense (Cout, L) store per image.
        out_n = jnp.zeros((cout, L), jnp.float32)
        for ci in range(cin):
            out_n = out_n + pw[:, ci:ci + 1] * acc[ci:ci + 1, :]
        o_ref[n] = out_n.astype(o_ref.dtype)


def separable_conv2d(x_nchw, dw_weight, pw_weight, *, stride=1, padding=0,
                     dilation=1, batch_blocks=None):
    """Forward pass of SeparableConv2d.

    x_nchw   : (N, Cin, H, W)      input, PyTorch layout
    dw_weight: (Cin, 1, K, K)      depthwise conv weight (PyTorch layout)
    pw_weight: (Cout, Cin, 1, 1)   pointwise conv weight (PyTorch layout)
    returns  : (N, Cout, Ho, Wo)
    """
    # TODO(synk): stride > 1 (strided window) not implemented; module default is 1.
    assert stride == 1, "only stride=1 supported"

    N, Cin, H, W = x_nchw.shape
    K = dw_weight.shape[2]
    Cout = pw_weight.shape[0]
    Ho = H + 2 * padding - dilation * (K - 1)
    Wo = W + 2 * padding - dilation * (K - 1)
    assert Ho > 0 and Wo > 0, "padding/dilation yield non-positive output size"
    # The flat-spatial formulation computes on the full HxW grid, which covers
    # the true output whenever padding <= "same".
    # TODO(synk): support 2*padding > dilation*(K-1) (output larger than input).
    assert Ho <= H and Wo <= W, "padding larger than 'same' not supported"

    L = H * W
    ext = dilation * (K - 1) * (W + 1)

    # Tiny f32 weight tables, used as broadcast vectors from VMEM.
    dw_tbl = dw_weight[:, 0, :, :].reshape(Cin, K * K).astype(jnp.float32)
    pw_tbl = pw_weight[:, :, 0, 0].astype(jnp.float32)

    # Static per-kw column-validity masks (exact zero-padding semantics in the
    # lane-flattened layout).  Pure numpy -> baked constants, no extra device op.
    col = np.arange(L, dtype=np.int32) % W
    koff = np.arange(K, dtype=np.int32)[:, None] * dilation - padding
    cmask = jnp.asarray(((col[None, :] + koff >= 0)
                         & (col[None, :] + koff < W)).astype(np.float32))

    # Lane-dense layout: collapse the two minor dims (pure layout plumbing).
    x_flat = x_nchw.reshape(N, Cin, L)

    # Grid: keep >=2 "parallel" batch blocks when possible so both v7x
    # TensorCores get work; v5e/v6e (1 TC) only pay one extra ~0.35us step.
    # Larger batches are merged into the block to amortize per-step overhead.
    if batch_blocks is None:
        batch_blocks = 2 if (N >= 2 and N % 2 == 0) else N
    assert N % batch_blocks == 0
    nb = N // batch_blocks

    kernel = functools.partial(_sepconv_kernel, K=K, dilation=dilation,
                               padding=padding, W=W, cin=Cin, cout=Cout, nb=nb)

    # TODO(synk): at production image sizes, tile H*W across the grid with a
    # (K-1)*dilation*W halo and set vmem_limit_bytes so double-buffered blocks
    # stay under v7x's 64 MiB VMEM (128 MiB on v5e/v6e).
    out_flat = pl.pallas_call(
        kernel,
        out_shape=jax.ShapeDtypeStruct((N, Cout, L), x_nchw.dtype),
        grid_spec=pltpu.PrefetchScalarGridSpec(
            num_scalar_prefetch=0,
            grid=(batch_blocks,),
            in_specs=[
                pl.BlockSpec((nb, Cin, L), lambda i: (i, 0, 0)),   # x (flat)
                pl.BlockSpec((Cin, K * K), lambda i: (0, 0)),      # dw taps
                pl.BlockSpec((Cout, Cin), lambda i: (0, 0)),       # pw weights
                pl.BlockSpec((K, L), lambda i: (0, 0)),            # column masks
            ],
            out_specs=pl.BlockSpec((nb, Cout, L), lambda i: (i, 0, 0)),
            scratch_shapes=[pltpu.VMEM((Cin, L + ext), jnp.float32)],
        ),
        compiler_params=pltpu.CompilerParams(
            dimension_semantics=("parallel",)),
    )(x_flat, dw_tbl, pw_tbl, cmask)

    out = out_flat.reshape(N, Cout, H, W)
    if (Ho, Wo) != (H, W):
        out = out[:, :, :Ho, :Wo]
    return out


def _reference(x_nchw, dw_weight, pw_weight, *, padding, dilation):
    """Pure-JAX reference matching PyTorch's grouped conv + 1x1 conv."""
    Cin = x_nchw.shape[1]
    dw = jax.lax.conv_general_dilated(
        x_nchw, dw_weight,
        window_strides=(1, 1),
        padding=[(padding, padding), (padding, padding)],
        rhs_dilation=(dilation, dilation),
        feature_group_count=Cin,
        dimension_numbers=("NCHW", "OIHW", "NCHW"))
    return jax.lax.conv_general_dilated(
        dw, pw_weight,
        window_strides=(1, 1),
        padding="VALID",
        dimension_numbers=("NCHW", "OIHW", "NCHW"))


if __name__ == "__main__":
    # Module config (synthetic, deterministic): in=4, out=8, k=3, pad=1, dil=1, bias=False
    N, Cin, H, W = 2, 4, 16, 16
    Cout, K, PAD, DIL = 8, 3, 1, 1

    key = jax.random.PRNGKey(0)
    kx, kdw, kpw = jax.random.split(key, 3)
    x = jax.random.normal(kx, (N, Cin, H, W), jnp.float32)
    dw_weight = jax.random.normal(kdw, (Cin, 1, K, K), jnp.float32) * 0.1
    pw_weight = jax.random.normal(kpw, (Cout, Cin, 1, 1), jnp.float32) * 0.1

    out = separable_conv2d(x, dw_weight, pw_weight,
                           stride=1, padding=PAD, dilation=DIL)
    out = jax.block_until_ready(out)

    ref = _reference(x, dw_weight, pw_weight, padding=PAD, dilation=DIL)
    assert out.shape == ref.shape, (out.shape, ref.shape)
    assert jnp.allclose(out, ref, atol=1e-4, rtol=1e-4), "mismatch vs reference"

    print("KERNEL_OK")
</pallas_src>

<mosaic_0001>
module attributes {stable_mosaic.version = 11 : i64} {
  func.func @_sepconv_kernel(%arg0: i32, %arg1: memref<1x4x256xf32, #tpu.memory_space<vmem>>, %arg2: memref<4x9xf32, #tpu.memory_space<vmem>>, %arg3: memref<8x4xf32, #tpu.memory_space<vmem>>, %arg4: memref<3x256xf32, #tpu.memory_space<vmem>>, %arg5: memref<1x8x256xf32, #tpu.memory_space<vmem>>, %arg6: memref<4x290xf32, #tpu.memory_space<vmem>>) attributes {dimension_semantics = [#tpu.dimension_semantics<parallel>], iteration_bounds = array<i64: 2>, scalar_prefetch = 0 : i64, scratch_operands = 1 : i64, tpu.core_type = #tpu.core_type<tc>, window_params = [{transform_indices = @transform_0, window_bounds = array<i64: 1, 4, 256>}, {pipeline_mode = #tpu.pipeline_mode<synchronous>, transform_indices = @transform_1, window_bounds = array<i64: 4, 9>}, {pipeline_mode = #tpu.pipeline_mode<synchronous>, transform_indices = @transform_2, window_bounds = array<i64: 8, 4>}, {pipeline_mode = #tpu.pipeline_mode<synchronous>, transform_indices = @transform_3, window_bounds = array<i64: 3, 256>}, {transform_indices = @transform_4, window_bounds = array<i64: 1, 8, 256>}]} {
    %c0 = arith.constant 0 : index
    %c0_0 = arith.constant 0 : index
    %0 = vector.load %arg2[%c0, %c0_0] : memref<4x9xf32, #tpu.memory_space<vmem>>, vector<4x9xf32>
    %c0_1 = arith.constant 0 : index
    %c0_2 = arith.constant 0 : index
    %1 = vector.load %arg3[%c0_1, %c0_2] : memref<8x4xf32, #tpu.memory_space<vmem>>, vector<8x4xf32>
    %c0_3 = arith.constant 0 : index
    %c0_4 = arith.constant 0 : index
    %2 = vector.load %arg4[%c0_3, %c0_4] : memref<3x256xf32, #tpu.memory_space<vmem>>, vector<3x256xf32>
    %cst = arith.constant 0.000000e+00 : f32
    %3 = vector.broadcast %cst : f32 to vector<4x290xf32>
    %c0_5 = arith.constant 0 : index
    %c0_6 = arith.constant 0 : index
    %4 = vector.load %arg6[%c0_5, %c0_6] : memref<4x290xf32, #tpu.memory_space<vmem>>, vector<4x290xf32>
    tpu.vector_store %arg6[%c0_5, %c0_6], %3 {strides = array<i32>} : memref<4x290xf32, #tpu.memory_space<vmem>>, vector<4x290xf32>,
    %c0_7 = arith.constant 0 : index
    %c0_8 = arith.constant 0 : index
    %c0_9 = arith.constant 0 : index
    %5 = vector.load %arg1[%c0_7, %c0_8, %c0_9] : memref<1x4x256xf32, #tpu.memory_space<vmem>>, vector<1x4x256xf32>
    %6 = vector.shape_cast %5 : vector<1x4x256xf32> to vector<4x256xf32>
    %c0_10 = arith.constant 0 : index
    %c17 = arith.constant 17 : index
    %7 = vector.load %arg6[%c0_10, %c17] : memref<4x290xf32, #tpu.memory_space<vmem>>, vector<4x256xf32>
    tpu.vector_store %arg6[%c0_10, %c17], %6 {strides = array<i32>} : memref<4x290xf32, #tpu.memory_space<vmem>>, vector<4x256xf32>,
    %cst_11 = arith.constant 0.000000e+00 : f32
    %8 = vector.broadcast %cst_11 : f32 to vector<4x256xf32>
    %c0_12 = arith.constant 0 : index
    %c0_13 = arith.constant 0 : index
    %9 = vector.load %arg6[%c0_12, %c0_13] : memref<4x290xf32, #tpu.memory_space<vmem>>, vector<4x256xf32>
    %10 = vector.extract_strided_slice %2 {offsets = [0, 0], sizes = [1, 256], strides = [1, 1]} : vector<3x256xf32> to vector<1x256xf32>
    %11 = vector.broadcast %10 : vector<1x256xf32> to vector<4x256xf32>
    %12 = arith.mulf %9, %11 : vector<4x256xf32>
    %13 = vector.extract_strided_slice %0 {offsets = [0, 0], sizes = [4, 1], strides = [1, 1]} : vector<4x9xf32> to vector<4x1xf32>
    %14 = vector.broadcast %13 : vector<4x1xf32> to vector<4x256xf32>
    %15 = arith.mulf %14, %12 : vector<4x256xf32>
    %16 = arith.addf %8, %15 : vector<4x256xf32>
    %c0_14 = arith.constant 0 : index
    %c1 = arith.constant 1 : index
    %17 = vector.load %arg6[%c0_14, %c1] : memref<4x290xf32, #tpu.memory_space<vmem>>, vector<4x256xf32>
    %18 = vector.extract_strided_slice %2 {offsets = [1, 0], sizes = [1, 256], strides = [1, 1]} : vector<3x256xf32> to vector<1x256xf32>
    %19 = vector.broadcast %18 : vector<1x256xf32> to vector<4x256xf32>
    %20 = arith.mulf %17, %19 : vector<4x256xf32>
    %21 = vector.extract_strided_slice %0 {offsets = [0, 1], sizes = [4, 1], strides = [1, 1]} : vector<4x9xf32> to vector<4x1xf32>
    %22 = vector.broadcast %21 : vector<4x1xf32> to vector<4x256xf32>
    %23 = arith.mulf %22, %20 : vector<4x256xf32>
    %24 = arith.addf %16, %23 : vector<4x256xf32>
    %c0_15 = arith.constant 0 : index
    %c2 = arith.constant 2 : index
    %25 = vector.load %arg6[%c0_15, %c2] : memref<4x290xf32, #tpu.memory_space<vmem>>, vector<4x256xf32>
    %26 = vector.extract_strided_slice %2 {offsets = [2, 0], sizes = [1, 256], strides = [1, 1]} : vector<3x256xf32> to vector<1x256xf32>
    %27 = vector.broadcast %26 : vector<1x256xf32> to vector<4x256xf32>
    %28 = arith.mulf %25, %27 : vector<4x256xf32>
    %29 = vector.extract_strided_slice %0 {offsets = [0, 2], sizes = [4, 1], strides = [1, 1]} : vector<4x9xf32> to vector<4x1xf32>
    %30 = vector.broadcast %29 : vector<4x1xf32> to vector<4x256xf32>
    %31 = arith.mulf %30, %28 : vector<4x256xf32>
    %32 = arith.addf %24, %31 : vector<4x256xf32>
    %c0_16 = arith.constant 0 : index
    %c16 = arith.constant 16 : index
    %33 = vector.load %arg6[%c0_16, %c16] : memref<4x290xf32, #tpu.memory_space<vmem>>, vector<4x256xf32>
    %34 = vector.extract_strided_slice %2 {offsets = [0, 0], sizes = [1, 256], strides = [1, 1]} : vector<3x256xf32> to vector<1x256xf32>
    %35 = vector.broadcast %34 : vector<1x256xf32> to vector<4x256xf32>
    %36 = arith.mulf %33, %35 : vector<4x256xf32>
    %37 = vector.extract_strided_slice %0 {offsets = [0, 3], sizes = [4, 1], strides = [1, 1]} : vector<4x9xf32> to vector<4x1xf32>
    %38 = vector.broadcast %37 : vector<4x1xf32> to vector<4x256xf32>
    %39 = arith.mulf %38, %36 : vector<4x256xf32>
    %40 = arith.addf %32, %39 : vector<4x256xf32>
    %c0_17 = arith.constant 0 : index
    %c17_18 = arith.constant 17 : index
    %41 = vector.load %arg6[%c0_17, %c17_18] : memref<4x290xf32, #tpu.memory_space<vmem>>, vector<4x256xf32>
    %42 = vector.extract_strided_slice %2 {offsets = [1, 0], sizes = [1, 256], strides = [1, 1]} : vector<3x256xf32> to vector<1x256xf32>
    %43 = vector.broadcast %42 : vector<1x256xf32> to vector<4x256xf32>
    %44 = arith.mulf %41, %43 : vector<4x256xf32>
    %45 = vector.extract_strided_slice %0 {offsets = [0, 4], sizes = [4, 1], strides = [1, 1]} : vector<4x9xf32> to vector<4x1xf32>
    %46 = vector.broadcast %45 : vector<4x1xf32> to vector<4x256xf32>
    %47 = arith.mulf %46, %44 : vector<4x256xf32>
    %48 = arith.addf %40, %47 : vector<4x256xf32>
    %c0_19 = arith.constant 0 : index
    %c18 = arith.constant 18 : index
    %49 = vector.load %arg6[%c0_19, %c18] : memref<4x290xf32, #tpu.memory_space<vmem>>, vector<4x256xf32>
    %50 = vector.extract_strided_slice %2 {offsets = [2, 0], sizes = [1, 256], strides = [1, 1]} : vector<3x256xf32> to vector<1x256xf32>
    %51 = vector.broadcast %50 : vector<1x256xf32> to vector<4x256xf32>
    %52 = arith.mulf %49, %51 : vector<4x256xf32>
    %53 = vector.extract_strided_slice %0 {offsets = [0, 5], sizes = [4, 1], strides = [1, 1]} : vector<4x9xf32> to vector<4x1xf32>
    %54 = vector.broadcast %53 : vector<4x1xf32> to vector<4x256xf32>
    %55 = arith.mulf %54, %52 : vector<4x256xf32>
    %56 = arith.addf %48, %55 : vector<4x256xf32>
    %c0_20 = arith.constant 0 : index
    %c32 = arith.constant 32 : index
    %57 = vector.load %arg6[%c0_20, %c32] : memref<4x290xf32, #tpu.memory_space<vmem>>, vector<4x256xf32>
    %58 = vector.extract_strided_slice %2 {offsets = [0, 0], sizes = [1, 256], strides = [1, 1]} : vector<3x256xf32> to vector<1x256xf32>
    %59 = vector.broadcast %58 : vector<1x256xf32> to vector<4x256xf32>
    %60 = arith.mulf %57, %59 : vector<4x256xf32>
    %61 = vector.extract_strided_slice %0 {offsets = [0, 6], sizes = [4, 1], strides = [1, 1]} : vector<4x9xf32> to vector<4x1xf32>
    %62 = vector.broadcast %61 : vector<4x1xf32> to vector<4x256xf32>
    %63 = arith.mulf %62, %60 : vector<4x256xf32>
    %64 = arith.addf %56, %63 : vector<4x256xf32>
    %c0_21 = arith.constant 0 : index
    %c33 = arith.constant 33 : index
    %65 = vector.load %arg6[%c0_21, %c33] : memref<4x290xf32, #tpu.memory_space<vmem>>, vector<4x256xf32>
    %66 = vector.extract_strided_slice %2 {offsets = [1, 0], sizes = [1, 256], strides = [1, 1]} : vector<3x256xf32> to vector<1x256xf32>
    %67 = vector.broadcast %66 : vector<1x256xf32> to vector<4x256xf32>
    %68 = arith.mulf %65, %67 : vector<4x256xf32>
    %69 = vector.extract_strided_slice %0 {offsets = [0, 7], sizes = [4, 1], strides = [1, 1]} : vector<4x9xf32> to vector<4x1xf32>
    %70 = vector.broadcast %69 : vector<4x1xf32> to vector<4x256xf32>
    %71 = arith.mulf %70, %68 : vector<4x256xf32>
    %72 = arith.addf %64, %71 : vector<4x256xf32>
    %c0_22 = arith.constant 0 : index
    %c34 = arith.constant 34 : index
    %73 = vector.load %arg6[%c0_22, %c34] : memref<4x290xf32, #tpu.memory_space<vmem>>, vector<4x256xf32>
    %74 = vector.extract_strided_slice %2 {offsets = [2, 0], sizes = [1, 256], strides = [1, 1]} : vector<3x256xf32> to vector<1x256xf32>
    %75 = vector.broadcast %74 : vector<1x256xf32> to vector<4x256xf32>
    %76 = arith.mulf %73, %75 : vector<4x256xf32>
    %77 = vector.extract_strided_slice %0 {offsets = [0, 8], sizes = [4, 1], strides = [1, 1]} : vector<4x9xf32> to vector<4x1xf32>
    %78 = vector.broadcast %77 : vector<4x1xf32> to vector<4x256xf32>
    %79 = arith.mulf %78, %76 : vector<4x256xf32>
    %80 = arith.addf %72, %79 : vector<4x256xf32>
    %cst_23 = arith.constant 0.000000e+00 : f32
    %81 = vector.broadcast %cst_23 : f32 to vector<8x256xf32>
    %82 = vector.extract_strided_slice %1 {offsets = [0, 0], sizes = [8, 1], strides = [1, 1]} : vector<8x4xf32> to vector<8x1xf32>
    %83 = vector.extract_strided_slice %80 {offsets = [0, 0], sizes = [1, 256], strides = [1, 1]} : vector<4x256xf32> to vector<1x256xf32>
    %84 = vector.broadcast %82 : vector<8x1xf32> to vector<8x256xf32>
    %85 = vector.broadcast %83 : vector<1x256xf32> to vector<8x256xf32>
    %86 = arith.mulf %84, %85 : vector<8x256xf32>
    %87 = arith.addf %81, %86 : vector<8x256xf32>
    %88 = vector.extract_strided_slice %1 {offsets = [0, 1], sizes = [8, 1], strides = [1, 1]} : vector<8x4xf32> to vector<8x1xf32>
    %89 = vector.extract_strided_slice %80 {offsets = [1, 0], sizes = [1, 256], strides = [1, 1]} : vector<4x256xf32> to vector<1x256xf32>
    %90 = vector.broadcast %88 : vector<8x1xf32> to vector<8x256xf32>
    %91 = vector.broadcast %89 : vector<1x256xf32> to vector<8x256xf32>
    %92 = arith.mulf %90, %91 : vector<8x256xf32>
    %93 = arith.addf %87, %92 : vector<8x256xf32>
    %94 = vector.extract_strided_slice %1 {offsets = [0, 2], sizes = [8, 1], strides = [1, 1]} : vector<8x4xf32> to vector<8x1xf32>
    %95 = vector.extract_strided_slice %80 {offsets = [2, 0], sizes = [1, 256], strides = [1, 1]} : vector<4x256xf32> to vector<1x256xf32>
    %96 = vector.broadcast %94 : vector<8x1xf32> to vector<8x256xf32>
    %97 = vector.broadcast %95 : vector<1x256xf32> to vector<8x256xf32>
    %98 = arith.mulf %96, %97 : vector<8x256xf32>
    %99 = arith.addf %93, %98 : vector<8x256xf32>
    %100 = vector.extract_strided_slice %1 {offsets = [0, 3], sizes = [8, 1], strides = [1, 1]} : vector<8x4xf32> to vector<8x1xf32>
    %101 = vector.extract_strided_slice %80 {offsets = [3, 0], sizes = [1, 256], strides = [1, 1]} : vector<4x256xf32> to vector<1x256xf32>
    %102 = vector.broadcast %100 : vector<8x1xf32> to vector<8x256xf32>
    %103 = vector.broadcast %101 : vector<1x256xf32> to vector<8x256xf32>
    %104 = arith.mulf %102, %103 : vector<8x256xf32>
    %105 = arith.addf %99, %104 : vector<8x256xf32>
    %c0_24 = arith.constant 0 : index
    %c0_25 = arith.constant 0 : index
    %c0_26 = arith.constant 0 : index
    %106 = vector.load %arg5[%c0_24, %c0_25, %c0_26] : memref<1x8x256xf32, #tpu.memory_space<vmem>>, vector<1x8x256xf32>
    %107 = vector.shape_cast %106 : vector<1x8x256xf32> to vector<8x256xf32>
    %108 = vector.shape_cast %105 : vector<8x256xf32> to vector<1x8x256xf32>
    tpu.vector_store %arg5[%c0_24, %c0_25, %c0_26], %108 {strides = array<i32>} : memref<1x8x256xf32, #tpu.memory_space<vmem>>, vector<1x8x256xf32>,
    return
  }
  func.func @transform_0(%arg0: i32) -> (i32, i32, i32) {
    %c0_i32 = arith.constant 0 : i32
    %c0_i32_0 = arith.constant 0 : i32
    %c0_i32_1 = arith.constant 0 : i32
    return %arg0, %c0_i32, %c0_i32_0 : i32, i32, i32
  }
  func.func @transform_1(%arg0: i32) -> (i32, i32) {
    %c0_i32 = arith.constant 0 : i32
    %c0_i32_0 = arith.constant 0 : i32
    %c0_i32_1 = arith.constant 0 : i32
    return %c0_i32, %c0_i32_0 : i32, i32
  }
  func.func @transform_2(%arg0: i32) -> (i32, i32) {
    %c0_i32 = arith.constant 0 : i32
    %c0_i32_0 = arith.constant 0 : i32
    %c0_i32_1 = arith.constant 0 : i32
    return %c0_i32, %c0_i32_0 : i32, i32
  }
  func.func @transform_3(%arg0: i32) -> (i32, i32) {
    %c0_i32 = arith.constant 0 : i32
    %c0_i32_0 = arith.constant 0 : i32
    %c0_i32_1 = arith.constant 0 : i32
    return %c0_i32, %c0_i32_0 : i32, i32
  }
  func.func @transform_4(%arg0: i32) -> (i32, i32, i32) {
    %c0_i32 = arith.constant 0 : i32
    %c0_i32_0 = arith.constant 0 : i32
    %c0_i32_1 = arith.constant 0 : i32
    return %arg0, %c0_i32, %c0_i32_0 : i32, i32, i32
  }
}

</mosaic_0001>

<llo_original>
// kernel: tpu_custom_call.1
$region0: #{tpu_custom_call.1}
  #allocation0 [shape = 'u32[]', space=smem, size = 0x4, offset = 0x4, fixed_abs, tag = 'smem constant byte address 0x4 - core index']
  #allocation1 [shape = 'u32[144,128]{1,0:T(1,128)}', space=vmem, size = 0x12000, scoped, tag = 'internal scratch']
  #allocation2 [shape = 'f32[4,290]{1,0:T(4,128)}', space=vmem, size = 0x1800, scoped, tag = 'scratch operand']
  %s0 = inlined_call_operand.hbm [shape: f32[2,4,256], index: 0, kind: input, shape index: {}]
  %s1 = inlined_call_operand.vmem [shape: f32[4,9], index: 1, kind: input, shape index: {}]
  %s2 = inlined_call_operand.vmem [shape: f32[8,4], index: 2, kind: input, shape index: {}]
  %s3 = inlined_call_operand.vmem [shape: f32[3,256], index: 3, kind: input, shape index: {}]
  %s4 = inlined_call_operand.hbm [shape: f32[2,8,256], index: 4, kind: output, shape index: {}]
  %s5 = sld [smem:[#allocation0]]
  $region53: #{tpu_custom_call.1} parent=0
    _
  %s7 = ssub.s32 1, %s5
  %s8 = scalar_select 0, %s7, %s5
  $region1: #{tpu_custom_call.1} parent=0
    #allocation3 [shape = 'u8[8192]{0}', space=vmem, size = 0x2000, scoped, tag = 'input window, operand 0']
    #allocation4 [shape = 's32[2]{0}', space=sflag, size = 0x8, scoped, tag = 'scoped memory for tpu_custom_call.1']
    #allocation5 [shape = 's32[2]{0}', space=sflag, size = 0x8, scoped, tag = 'scoped memory for tpu_custom_call.1']
    #allocation6 [shape = 'u8[16384]{0}', space=vmem, size = 0x4000, scoped, tag = 'output window, operand 0']
    %9 = vsyncpa [#allocation4], 0
    %s10 = scalar_lea.sflag [#allocation4], 1
    %11 = vsyncpa %s10, 0
    %12 = vsyncpa [#allocation5], 0
    %s13 = scalar_lea.sflag [#allocation5], 1
    %14 = vsyncpa %s13, 0
    loop: start=0, step=1, limit=4
    $region2: #{tpu_custom_call.1} parent=1 // loop_pre_header
      _
    $region3: #{tpu_custom_call.1} parent=1 // loop_header
      %s16 = sphi 0, %s20
      %p17 = scmp.ge.s32.totalorder %s16, 4
      %s26 = sphi 0, %s28
      %s29 = sphi 0, %s26
      %s30 = sphi 0, %s29
      %s46 = sphi 0, %s30
      %s50 = sphi 0, %s50
      %s52 = sphi 0, %s50
      %s53 = sphi 0, %s52
      %s67 = sphi 0, %s53
      %s71 = sphi 0, %s71
      %s73 = sphi 0, %s71
      %s74 = sphi 0, %s73
      %s88 = sphi 0, %s74
      %s92 = sphi 0, %s92
      %s94 = sphi 0, %s92
      %s95 = sphi 0, %s94
      %s109 = sphi 0, %s95
      %s115 = sphi 0, %s117
      %s118 = sphi 0, %s115
      %s119 = sphi 0, %s118
      %s135 = sphi 0, %s119
    $region4: #{tpu_custom_call.1} parent=1 // loop_header_branch
      %19 = sbr.rel (%p17) target = $region8
    $region5: #{tpu_custom_call.1} parent=1 // loop_body
      %s21 = ssub.s32 %s16, 1
      %s22 = ssub.s32 %s16, 2
      %s23 = sadd.s32 %s16, 1
      %s24 = ssub.s32 %s16, %s23
      %p25 = scmp.eq.s32.totalorder %s24, 0
      %s27 = sadd.s32 %s26, 1
      %s28 = scalar_select %p25, %s26, %s27
      %p31 = pneg %p25
      %p32 = scmp.eq.s32.totalorder %s16, 1
      %p33 = por %p31, %p32
      %p34 = scmp.ne.s32.totalorder %s26, %s29
      %p35 = scmp.eq.s32.totalorder %s16, 0
      %p36 = por %p34, %p35
      %p37 = scmp.ne.s32.totalorder %s26, %s29
      %p38 = scmp.eq.s32.totalorder %s21, 1
      %p39 = por %p37, %p38
      %p40 = scmp.ne.s32.totalorder %s29, %s30
      %p41 = scmp.eq.s32.totalorder %s21, 0
      %p42 = por %p40, %p41
      %p43 = scmp.ne.s32.totalorder %s29, %s30
      %p44 = scmp.eq.s32.totalorder %s22, 1
      %p45 = por %p43, %p44
      %p47 = scmp.ne.s32.totalorder %s30, %s46
      %p48 = scmp.eq.s32.totalorder %s22, 0
      %p49 = por %p47, %p48
      %s51 = sadd.s32 %s50, 1
      %p54 = scmp.eq.s32.totalorder %s16, 1
      %p55 = scmp.ne.s32.totalorder %s50, %s52
      %p56 = scmp.eq.s32.totalorder %s16, 0
      %p57 = por %p55, %p56
      %p58 = scmp.ne.s32.totalorder %s50, %s52
      %p59 = scmp.eq.s32.totalorder %s21, 1
      %p60 = por %p58, %p59
      %p61 = scmp.ne.s32.totalorder %s52, %s53
      %p62 = scmp.eq.s32.totalorder %s21, 0
      %p63 = por %p61, %p62
      %p64 = scmp.ne.s32.totalorder %s52, %s53
      %p65 = scmp.eq.s32.totalorder %s22, 1
      %p66 = por %p64, %p65
      %p68 = scmp.ne.s32.totalorder %s53, %s67
      %p69 = scmp.eq.s32.totalorder %s22, 0
      %p70 = por %p68, %p69
      %s72 = sadd.s32 %s71, 1
      %p75 = scmp.eq.s32.totalorder %s16, 1
      %p76 = scmp.ne.s32.totalorder %s71, %s73
      %p77 = scmp.eq.s32.totalorder %s16, 0
      %p78 = por %p76, %p77
      %p79 = scmp.ne.s32.totalorder %s71, %s73
      %p80 = scmp.eq.s32.totalorder %s21, 1
      %p81 = por %p79, %p80
      %p82 = scmp.ne.s32.totalorder %s73, %s74
      %p83 = scmp.eq.s32.totalorder %s21, 0
      %p84 = por %p82, %p83
      %p85 = scmp.ne.s32.totalorder %s73, %s74
      %p86 = scmp.eq.s32.totalorder %s22, 1
      %p87 = por %p85, %p86
      %p89 = scmp.ne.s32.totalorder %s74, %s88
      %p90 = scmp.eq.s32.totalorder %s22, 0
      %p91 = por %p89, %p90
      %s93 = sadd.s32 %s92, 1
      %p96 = scmp.eq.s32.totalorder %s16, 1
      %p97 = scmp.ne.s32.totalorder %s92, %s94
      %p98 = scmp.eq.s32.totalorder %s16, 0
      %p99 = por %p97, %p98
      %p100 = scmp.ne.s32.totalorder %s92, %s94
      %p101 = scmp.eq.s32.totalorder %s21, 1
      %p102 = por %p100, %p101
      %p103 = scmp.ne.s32.totalorder %s94, %s95
      %p104 = scmp.eq.s32.totalorder %s21, 0
      %p105 = por %p103, %p104
      %p106 = scmp.ne.s32.totalorder %s94, %s95
      %p107 = scmp.eq.s32.totalorder %s22, 1
      %p108 = por %p106, %p107
      %p110 = scmp.ne.s32.totalorder %s95, %s109
      %p111 = scmp.eq.s32.totalorder %s22, 0
      %p112 = por %p110, %p111
      %s113 = ssub.s32 %s16, %s23
      %p114 = scmp.eq.s32.totalorder %s113, 0
      %s116 = sadd.s32 %s115, 1
      %s117 = scalar_select %p114, %s115, %s116
      %p120 = pneg %p114
      %p121 = scmp.eq.s32.totalorder %s16, 1
      %p122 = por %p120, %p121
      %p123 = scmp.ne.s32.totalorder %s115, %s118
      %p124 = scmp.eq.s32.totalorder %s16, 0
      %p125 = por %p123, %p124
      %p126 = scmp.ne.s32.totalorder %s115, %s118
      %p127 = scmp.eq.s32.totalorder %s21, 1
      %p128 = por %p126, %p127
      %p129 = scmp.ne.s32.totalorder %s118, %s119
      %p130 = scmp.eq.s32.totalorder %s21, 0
      %p131 = por %p129, %p130
      %p132 = scmp.ne.s32.totalorder %s118, %s119
      %p133 = scmp.eq.s32.totalorder %s22, 1
      %p134 = por %p132, %p133
      %p136 = scmp.ne.s32.totalorder %s119, %s135
      %p137 = scmp.eq.s32.totalorder %s22, 0
      %p138 = por %p136, %p137
      %p139 = scmp.le.s32.totalorder 1, %s16
      %p140 = scmp.lt.s32.totalorder %s16, 3
      %p141 = pnand %p139, %p140
      %p142 = pneg %p141
      // Predicated region
      $region9: #{tpu_custom_call.1} parent=5 // pred_check
        _
      $region10: #{tpu_custom_call.1} parent=5 // pred_check_branch
        %144 = sbr.rel (%p141) target = $region12
      $region11: #{tpu_custom_call.1} parent=5 // pred_region
        %s145 = ssub.s32 %s16, 1
        // Predicated region
        $region13: #{tpu_custom_call.1} parent=11 // pred_check
          %p146 = pneg %p63
        $region14: #{tpu_custom_call.1} parent=11 // pred_check_branch
          %148 = sbr.rel (%p146) target = $region16
        $region15: #{tpu_custom_call.1} parent=11 // pred_region
          _
        $region16: #{tpu_custom_call.1} parent=11 // pred_fallthru
          _
        // Predicated region
        $region17: #{tpu_custom_call.1} parent=11 // pred_check
          %p149 = pneg %p84
        $region18: #{tpu_custom_call.1} parent=11 // pred_check_branch
          %151 = sbr.rel (%p149) target = $region20
        $region19: #{tpu_custom_call.1} parent=11 // pred_region
          _
        $region20: #{tpu_custom_call.1} parent=11 // pred_fallthru
          _
        // Predicated region
        $region21: #{tpu_custom_call.1} parent=11 // pred_check
          %p152 = pneg %p105
        $region22: #{tpu_custom_call.1} parent=11 // pred_check_branch
          %154 = sbr.rel (%p152) target = $region24
        $region23: #{tpu_custom_call.1} parent=11 // pred_region
          _
        $region24: #{tpu_custom_call.1} parent=11 // pred_fallthru
          _
      $region12: #{tpu_custom_call.1} parent=5 // pred_fallthru
        _
      %p155 = scmp.lt.s32.totalorder %s16, 2
      // Predicated region
      $region25: #{tpu_custom_call.1} parent=5 // pred_check
        %p156 = pneg %p155
      $region26: #{tpu_custom_call.1} parent=5 // pred_check_branch
        %158 = sbr.rel (%p156) target = $region28
      $region27: #{tpu_custom_call.1} parent=5 // pred_region
        // Predicated region
        $region29: #{tpu_custom_call.1} parent=27 // pred_check
          %p159 = pneg %p36
        $region30: #{tpu_custom_call.1} parent=27 // pred_check_branch
          %161 = sbr.rel (%p159) target = $region32
        $region31: #{tpu_custom_call.1} parent=27 // pred_region
          %s162 = sand.u32 %s26, 1
          %s163 = scalar_lea.sflag [#allocation4], %s162
          %s164 = sand.u32 %s26, 1
          %s165 = smul.addr %s164, 8
          %s166 = scalar_lea.vmem [#allocation3], %s165
          %s168 = ssub.s32 128, 128
          %169 = vsyncadd %s163, %s168
          %s170 = smul.addr %s16, 2
          %s171 = smul.addr %s170, 64
          %s172 = scalar_lea.hbm %s0, %s171
          %s174 = sshll.u32 %s166, 4
          %s175 = int_to_ptr.vmem [resolvable:$true] %s174
          %177 = dma.hbm_to_vmem [thread:$0]  %s172, 128, %s175, %s163
        $region32: #{tpu_custom_call.1} parent=27 // pred_fallthru
          _
      $region28: #{tpu_custom_call.1} parent=5 // pred_fallthru
        _
      %p178 = scmp.le.s32.totalorder 1, %s16
      %p179 = scmp.lt.s32.totalorder %s16, 3
      %p180 = pnand %p178, %p179
      %p181 = pneg %p180
      // Predicated region
      $region33: #{tpu_custom_call.1} parent=5 // pred_check
        _
      $region34: #{tpu_custom_call.1} parent=5 // pred_check_branch
        %183 = sbr.rel (%p180) target = $region36
      $region35: #{tpu_custom_call.1} parent=5 // pred_region
        %s184 = ssub.s32 %s16, 1
        %s185 = sand.u32 %s29, 1
        %s186 = scalar_lea.sflag [#allocation4], %s185
        %s187 = sand.u32 %s29, 1
        %s188 = smul.addr %s187, 8
        %s189 = scalar_lea.vmem [#allocation3], %s188
        // Predicated region
        $region37: #{tpu_custom_call.1} parent=35 // pred_check
          %p190 = pneg %p42
        $region38: #{tpu_custom_call.1} parent=35 // pred_check_branch
          %192 = sbr.rel (%p190) target = $region40
        $region39: #{tpu_custom_call.1} parent=35 // pred_region
          %193 = dma.done %s186, 128
        $region40: #{tpu_custom_call.1} parent=35 // pred_fallthru
          _
        %s194 = sand.u32 %s29, 1
        %s195 = scalar_lea.sflag [#allocation4], %s194
        %s196 = sand.u32 %s29, 1
        %s197 = smul.addr %s196, 8
        %s198 = scalar_lea.vmem [#allocation3], %s197
        %p199 = pneg %p42
        %p200 = pneg %p39
        %p201 = pneg %p63
        %p202 = pneg %p60
        %p203 = pneg %p84
        %p204 = pneg %p81
        %p205 = pneg %p105
        %p206 = pneg %p102
        %p207 = pneg %p131
        %p208 = pneg %p128
        %s209 = sand.u32 %s118, 1
        %s210 = scalar_lea.sflag [#allocation5], %s209
        %s211 = sand.u32 %s118, 1
        %s212 = smul.addr %s211, 16
        %s213 = scalar_lea.vmem [#allocation6], %s212
        %v214 = vld [vmem:[%s1] sm:$0xf]
        %v215 = vld [vmem:[%s2] sm:$0xff]
        %v216 = vld [vmem:[%s3] sm:$0x77]
        %217 = vst [vmem:[#allocation2] sm:$0xff] 0.0
        %vm218 = vcmask 273408
        %219 = vst.msk [vmem:[#allocation2 + $0x8] sm:$0xf] %vm218, 0.0
        %v220 = vld [vmem:[%s189] sm:$0xff]
        %222 = vrot.lane.b32.xlu0 %v220, 17
        %v223 = vpop.permute.xlu0 %222
        %v224 = vrot.slane %v223, 4
        %vm225 = vcmask 138240
        %v226 = vsel %vm225, %v224, %v223
        %vm229 = vcmask 1043592
        %vm230 = vcmask 1047556
        %vm231 = vmor %vm230, %vm229
        %232 = vst.msk [vmem:[#allocation2] sm:$0xff] %vm231, %v226
        %vm233 = vcmask 134144
        %234 = vst.msk [vmem:[#allocation2 + $0x8] sm:$0xf] %vm233, %v224
        %v235 = vld [vmem:[#allocation2] sm:$0xff]
        %v237 = vlaneseq
        %v238 = vshrl.u32 %v237, 7
        %v239 = vsub.s32 0, %v238
        %v240 = vrot.slane %v216, %v239
        %v241 = vlaneseq
        %v242 = vshrl.u32 %v241, 7
        %v243 = vsub.s32 4, %v242
        %v244 = vrot.slane %v216, %v243
        %v247 = vlaneseq
        %v248 = vshrl.u32 %v247, 7
        %v249 = vsub.s32 0, %v248
        %v250 = vrot.slane %v240, %v249
        %v251 = vlaneseq
        %v252 = vshrl.u32 %v251, 7
        %v253 = vsub.s32 0, %v252
        %v254 = vrot.slane %v244, %v253
        %v257 = vcombine.low %v250, %v254
        %v259 = vmul.f32 %v235, %v257
        %261 = vset.pattern.permute.xlu0 0
        %262 = vperm.xlu0 %261, %v214
        %v263 = vpop.permute.xlu0 %262
        %v266 = vcombine.high %v259, %v259
        %v268 = vmul.f32 %v263, %v259
        %v269 = vmul.f32 %v263, %v266
        %v270 = vadd.f32 %v268, 0.0
        %v271 = vadd.f32 %v269, 0.0
        %v272 = vld [vmem:[#allocation2] sm:$0xff]
        %v273 = vld [vmem:[#allocation2 + $0x8] sm:$0xf]
        %v274 = vlaneseq
        %v275 = vshrl.u32 %v274, 7
        %v276 = vsub.s32 1, %v275
        %v277 = vrot.slane %v216, %v276
        %v278 = vlaneseq
        %v279 = vshrl.u32 %v278, 7
        %v280 = vsub.s32 5, %v279
        %v281 = vrot.slane %v216, %v280
        %v284 = vlaneseq
        %v285 = vshrl.u32 %v284, 7
        %v286 = vsub.s32 1, %v285
        %v287 = vrot.slane %v277, %v286
        %v288 = vlaneseq
        %v289 = vshrl.u32 %v288, 7
        %v290 = vsub.s32 1, %v289
        %v291 = vrot.slane %v281, %v290
        %v294 = vcombine.low %v287, %v291
        %295 = vrot.lane.b32.xlu0 %v294, 1
        %v296 = vpop.permute.xlu0 %295
        %v297 = vrot.slane %v296, 4
        %vm298 = vcmask 7168
        %v299 = vsel %vm298, %v297, %v296
        %v302 = vmul.f32 %v272, %v299
        %v303 = vmul.f32 %v273, %v297
        %304 = vset.pattern.permute.xlu0 1
        %305 = vperm.xlu0 %304, %v214
        %v306 = vpop.permute.xlu0 %305
        %v310 = vcombine.high %v302, %v302
        %311 = vrot.lane.b32.xlu0 %v302, 127
        %v312 = vpop.permute.xlu0 %311
        %313 = vrot.lane.b32.xlu0 %v310, 127
        %v314 = vpop.permute.xlu0 %313
        %315 = vrot.lane.b32.xlu0 %v303, 127
        %v316 = vpop.permute.xlu0 %315
        %vm317 = vcmask 1039360
        %v318 = vsel %vm317, %v312, %v314
        %v319 = vsel %vm317, %v314, %v316
        %v322 = vmul.f32 %v306, %v318
        %v323 = vmul.f32 %v306, %v319
        %v324 = vadd.f32 %v270, %v322
        %v325 = vadd.f32 %v271, %v323
        %v326 = vld [vmem:[#allocation2] sm:$0xff]
        %v327 = vld [vmem:[#allocation2 + $0x8] sm:$0xf]
        %v328 = vlaneseq
        %v329 = vshrl.u32 %v328, 7
        %v330 = vsub.s32 2, %v329
        %v331 = vrot.slane %v216, %v330
        %v332 = vlaneseq
        %v333 = vshrl.u32 %v332, 7
        %v334 = vsub.s32 6, %v333
        %v335 = vrot.slane %v216, %v334
        %v338 = vlaneseq
        %v339 = vshrl.u32 %v338, 7
        %v340 = vsub.s32 2, %v339
        %v341 = vrot.slane %v331, %v340
        %v342 = vlaneseq
        %v343 = vshrl.u32 %v342, 7
        %v344 = vsub.s32 2, %v343
        %v345 = vrot.slane %v335, %v344
        %v348 = vcombine.low %v341, %v345
        %349 = vrot.lane.b32.xlu0 %v348, 2
        %v350 = vpop.permute.xlu0 %349
        %v351 = vrot.slane %v350, 4
        %vm352 = vcmask 15360
        %v353 = vsel %vm352, %v351, %v350
        %v356 = vmul.f32 %v326, %v353
        %v357 = vmul.f32 %v327, %v351
        %358 = vset.pattern.permute.xlu0 2
        %359 = vperm.xlu0 %358, %v214
        %v360 = vpop.permute.xlu0 %359
        %v364 = vcombine.high %v356, %v356
        %365 = vrot.lane.b32.xlu0 %v356, 126
        %v366 = vpop.permute.xlu0 %365
        %367 = vrot.lane.b32.xlu0 %v364, 126
        %v368 = vpop.permute.xlu0 %367
        %369 = vrot.lane.b32.xlu0 %v357, 126
        %v370 = vpop.permute.xlu0 %369
        %vm371 = vcmask 1031168
        %v372 = vsel %vm371, %v366, %v368
        %v373 = vsel %vm371, %v368, %v370
        %v376 = vmul.f32 %v360, %v372
        %v377 = vmul.f32 %v360, %v373
        %v378 = vadd.f32 %v324, %v376
        %v379 = vadd.f32 %v325, %v377
        %v380 = vld [vmem:[#allocation2] sm:$0xff]
        %v381 = vld [vmem:[#allocation2 + $0x8] sm:$0xf]
        %382 = vrot.lane.b32.xlu0 %v257, 16
        %v383 = vpop.permute.xlu0 %382
        %v384 = vrot.slane %v383, 4
        %vm385 = vcmask 130048
        %v386 = vsel %vm385, %v384, %v383
        %v389 = vmul.f32 %v380, %v386
        %v390 = vmul.f32 %v381, %v384
        %391 = vset.pattern.permute.xlu0 3
        %392 = vperm.xlu0 %391, %v214
        %v393 = vpop.permute.xlu0 %392
        %v397 = vcombine.high %v389, %v389
        %398 = vrot.lane.b32.xlu0 %v389, 112
        %v399 = vpop.permute.xlu0 %398
        %400 = vrot.lane.b32.xlu0 %v397, 112
        %v401 = vpop.permute.xlu0 %400
        %402 = vrot.lane.b32.xlu0 %v390, 112
        %v403 = vpop.permute.xlu0 %402
        %vm404 = vcmask 916480
        %v405 = vsel %vm404, %v399, %v401
        %v406 = vsel %vm404, %v401, %v403
        %v409 = vmul.f32 %v393, %v405
        %v410 = vmul.f32 %v393, %v406
        %v411 = vadd.f32 %v378, %v409
        %v412 = vadd.f32 %v379, %v410
        %v413 = vld [vmem:[#allocation2] sm:$0xff]
        %v414 = vld [vmem:[#allocation2 + $0x8] sm:$0xf]
        %415 = vrot.lane.b32.xlu0 %v294, 17
        %v416 = vpop.permute.xlu0 %415
        %v417 = vrot.slane %v416, 4
        %v418 = vsel %vm225, %v417, %v416
        %v421 = vmul.f32 %v413, %v418
        %v422 = vmul.f32 %v414, %v417
        %423 = vset.pattern.permute.xlu0 4
        %424 = vperm.xlu0 %423, %v214
        %v425 = vpop.permute.xlu0 %424
        %v429 = vcombine.high %v421, %v421
        %430 = vrot.lane.b32.xlu0 %v421, 111
        %v431 = vpop.permute.xlu0 %430
        %432 = vrot.lane.b32.xlu0 %v429, 111
        %v433 = vpop.permute.xlu0 %432
        %434 = vrot.lane.b32.xlu0 %v422, 111
        %v435 = vpop.permute.xlu0 %434
        %vm436 = vcmask 908288
        %v437 = vsel %vm436, %v431, %v433
        %v438 = vsel %vm436, %v433, %v435
        %v441 = vmul.f32 %v425, %v437
        %v442 = vmul.f32 %v425, %v438
        %v443 = vadd.f32 %v411, %v441
        %v444 = vadd.f32 %v412, %v442
        %v445 = vld [vmem:[#allocation2] sm:$0xff]
        %v446 = vld [vmem:[#allocation2 + $0x8] sm:$0xf]
        %447 = vrot.lane.b32.xlu0 %v348, 18
        %v448 = vpop.permute.xlu0 %447
        %v449 = vrot.slane %v448, 4
        %vm450 = vcmask 146432
        %v451 = vsel %vm450, %v449, %v448
        %v454 = vmul.f32 %v445, %v451
        %v455 = vmul.f32 %v446, %v449
        %456 = vset.pattern.permute.xlu0 5
        %457 = vperm.xlu0 %456, %v214
        %v458 = vpop.permute.xlu0 %457
        %v462 = vcombine.high %v454, %v454
        %463 = vrot.lane.b32.xlu0 %v454, 110
        %v464 = vpop.permute.xlu0 %463
        %465 = vrot.lane.b32.xlu0 %v462, 110
        %v466 = vpop.permute.xlu0 %465
        %467 = vrot.lane.b32.xlu0 %v455, 110
        %v468 = vpop.permute.xlu0 %467
        %vm469 = vcmask 900096
        %v470 = vsel %vm469, %v464, %v466
        %v471 = vsel %vm469, %v466, %v468
        %v474 = vmul.f32 %v458, %v470
        %v475 = vmul.f32 %v458, %v471
        %v476 = vadd.f32 %v443, %v474
        %v477 = vadd.f32 %v444, %v475
        %v478 = vld [vmem:[#allocation2] sm:$0xff]
        %v479 = vld [vmem:[#allocation2 + $0x8] sm:$0xf]
        %480 = vrot.lane.b32.xlu0 %v257, 32
        %v481 = vpop.permute.xlu0 %480
        %v482 = vrot.slane %v481, 4
        %vm483 = vcmask 261120
        %v484 = vsel %vm483, %v482, %v481
        %v487 = vmul.f32 %v478, %v484
        %v488 = vmul.f32 %v479, %v482
        %489 = vset.pattern.permute.xlu0 6
        %490 = vperm.xlu0 %489, %v214
        %v491 = vpop.permute.xlu0 %490
        %v495 = vcombine.high %v487, %v487
        %496 = vrot.lane.b32.xlu0 %v487, 96
        %v497 = vpop.permute.xlu0 %496
        %498 = vrot.lane.b32.xlu0 %v495, 96
        %v499 = vpop.permute.xlu0 %498
        %500 = vrot.lane.b32.xlu0 %v488, 96
        %v501 = vpop.permute.xlu0 %500
        %vm502 = vcmask 785408
        %v503 = vsel %vm502, %v497, %v499
        %v504 = vsel %vm502, %v499, %v501
        %v507 = vmul.f32 %v491, %v503
        %v508 = vmul.f32 %v491, %v504
        %v509 = vadd.f32 %v476, %v507
        %v510 = vadd.f32 %v477, %v508
        %v511 = vld [vmem:[#allocation2] sm:$0xff]
        %v512 = vld [vmem:[#allocation2 + $0x8] sm:$0xf]
        %513 = vrot.lane.b32.xlu0 %v294, 33
        %v514 = vpop.permute.xlu0 %513
        %v515 = vrot.slane %v514, 4
        %vm516 = vcmask 269312
        %v517 = vsel %vm516, %v515, %v514
        %v520 = vmul.f32 %v511, %v517
        %v521 = vmul.f32 %v512, %v515
        %522 = vset.pattern.permute.xlu0 7
        %523 = vperm.xlu0 %522, %v214
        %v524 = vpop.permute.xlu0 %523
        %v528 = vcombine.high %v520, %v520
        %529 = vrot.lane.b32.xlu0 %v520, 95
        %v530 = vpop.permute.xlu0 %529
        %531 = vrot.lane.b32.xlu0 %v528, 95
        %v532 = vpop.permute.xlu0 %531
        %533 = vrot.lane.b32.xlu0 %v521, 95
        %v534 = vpop.permute.xlu0 %533
        %vm535 = vcmask 777216
        %v536 = vsel %vm535, %v530, %v532
        %v537 = vsel %vm535, %v532, %v534
        %v540 = vmul.f32 %v524, %v536
        %v541 = vmul.f32 %v524, %v537
        %v542 = vadd.f32 %v509, %v540
        %v543 = vadd.f32 %v510, %v541
        %v544 = vld [vmem:[#allocation2] sm:$0xff]
        %v545 = vld [vmem:[#allocation2 + $0x8] sm:$0xf]
        %546 = vrot.lane.b32.xlu0 %v348, 34
        %v547 = vpop.permute.xlu0 %546
        %v548 = vrot.slane %v547, 4
        %vm549 = vcmask 277504
        %v550 = vsel %vm549, %v548, %v547
        %v553 = vmul.f32 %v544, %v550
        %v554 = vmul.f32 %v545, %v548
        %555 = vset.pattern.permute.xlu0 8
        %556 = vperm.xlu0 %555, %v214
        %v557 = vpop.permute.xlu0 %556
        %v561 = vcombine.high %v553, %v553
        %562 = vrot.lane.b32.xlu0 %v553, 94
        %v563 = vpop.permute.xlu0 %562
        %564 = vrot.lane.b32.xlu0 %v561, 94
        %v565 = vpop.permute.xlu0 %564
        %566 = vrot.lane.b32.xlu0 %v554, 94
        %v567 = vpop.permute.xlu0 %566
        %vm568 = vcmask 769024
        %v569 = vsel %vm568, %v563, %v565
        %v570 = vsel %vm568, %v565, %v567
        %v573 = vmul.f32 %v557, %v569
        %v574 = vmul.f32 %v557, %v570
        %v575 = vadd.f32 %v542, %v573
        %v576 = vadd.f32 %v543, %v574
        %578 = vset.pattern.permute.xlu0 0
        %579 = vperm.xlu0 %578, %v215
        %v580 = vpop.permute.xlu0 %579
        %v582 = vlaneseq
        %v583 = vshrl.u32 %v582, 7
        %v584 = vsub.s32 0, %v583
        %v585 = vrot.slane %v575, %v584
        %v586 = vlaneseq
        %v587 = vshrl.u32 %v586, 7
        %v588 = vsub.s32 0, %v587
        %v589 = vrot.slane %v576, %v588
        %v590 = vmul.f32 %v580, %v585
        %v591 = vmul.f32 %v580, %v589
        %v592 = vadd.f32 %v590, 0.0
        %v593 = vadd.f32 %v591, 0.0
        %594 = vset.pattern.permute.xlu0 1
        %595 = vperm.xlu0 %594, %v215
        %v596 = vpop.permute.xlu0 %595
        %v598 = vlaneseq
        %v599 = vshrl.u32 %v598, 7
        %v600 = vsub.s32 1, %v599
        %v601 = vrot.slane %v575, %v600
        %v602 = vlaneseq
        %v603 = vshrl.u32 %v602, 7
        %v604 = vsub.s32 1, %v603
        %v605 = vrot.slane %v576, %v604
        %v606 = vmul.f32 %v596, %v601
        %v607 = vmul.f32 %v596, %v605
        %v608 = vadd.f32 %v592, %v606
        %v609 = vadd.f32 %v593, %v607
        %610 = vset.pattern.permute.xlu0 2
        %611 = vperm.xlu0 %610, %v215
        %v612 = vpop.permute.xlu0 %611
        %v614 = vlaneseq
        %v615 = vshrl.u32 %v614, 7
        %v616 = vsub.s32 2, %v615
        %v617 = vrot.slane %v575, %v616
        %v618 = vlaneseq
        %v619 = vshrl.u32 %v618, 7
        %v620 = vsub.s32 2, %v619
        %v621 = vrot.slane %v576, %v620
        %v622 = vmul.f32 %v612, %v617
        %v623 = vmul.f32 %v612, %v621
        %v624 = vadd.f32 %v608, %v622
        %v625 = vadd.f32 %v609, %v623
        %626 = vset.pattern.permute.xlu0 3
        %627 = vperm.xlu0 %626, %v215
        %v628 = vpop.permute.xlu0 %627
        %v630 = vlaneseq
        %v631 = vshrl.u32 %v630, 7
        %v632 = vsub.s32 3, %v631
        %v633 = vrot.slane %v575, %v632
        %v634 = vlaneseq
        %v635 = vshrl.u32 %v634, 7
        %v636 = vsub.s32 3, %v635
        %v637 = vrot.slane %v576, %v636
        %v638 = vmul.f32 %v628, %v633
        %v639 = vmul.f32 %v628, %v637
        %v640 = vadd.f32 %v624, %v638
        %v641 = vadd.f32 %v625, %v639
        %642 = vst [vmem:[%s213] sm:$0xff] %v640
        %643 = vst [vmem:[%s213 + $0x8] sm:$0xff] %v641
        %s644 = sand.u32 %s118, 1
        %s645 = scalar_lea.sflag [#allocation5], %s644
        %s646 = sand.u32 %s118, 1
        %s647 = smul.addr %s646, 16
        %s648 = scalar_lea.vmem [#allocation6], %s647
        // Predicated region
        $region41: #{tpu_custom_call.1} parent=35 // pred_check
          %p649 = pneg %p128
        $region42: #{tpu_custom_call.1} parent=35 // pred_check_branch
          %651 = sbr.rel (%p649) target = $region44
        $region43: #{tpu_custom_call.1} parent=35 // pred_region
          %s653 = ssub.s32 256, 256
          %654 = vsyncadd %s645, %s653
          %s655 = smul.addr %s21, 2
          %s656 = smul.addr %s655, 128
          %s657 = scalar_lea.hbm %s4, %s656
          %s659 = sshll.u32 %s648, 4
          %s660 = int_to_ptr.vmem [resolvable:$true] %s659
          %662 = dma.vmem_to_hbm [thread:$0]  %s660, 256, %s657, %s645
        $region44: #{tpu_custom_call.1} parent=35 // pred_fallthru
          _
      $region36: #{tpu_custom_call.1} parent=5 // pred_fallthru
        _
      %p663 = scmp.le.s32.totalorder 2, %s16
      // Predicated region
      $region45: #{tpu_custom_call.1} parent=5 // pred_check
        %p664 = pneg %p663
      $region46: #{tpu_custom_call.1} parent=5 // pred_check_branch
        %666 = sbr.rel (%p664) target = $region48
      $region47: #{tpu_custom_call.1} parent=5 // pred_region
        %s667 = ssub.s32 %s16, 2
        // Predicated region
        $region49: #{tpu_custom_call.1} parent=47 // pred_check
          %p668 = pneg %p134
        $region50: #{tpu_custom_call.1} parent=47 // pred_check_branch
          %670 = sbr.rel (%p668) target = $region52
        $region51: #{tpu_custom_call.1} parent=47 // pred_region
          %s671 = sand.u32 %s119, 1
          %s672 = scalar_lea.sflag [#allocation5], %s671
          %s673 = sand.u32 %s119, 1
          %s674 = smul.addr %s673, 16
          %s675 = scalar_lea.vmem [#allocation6], %s674
          %676 = dma.done %s672, 256
        $region52: #{tpu_custom_call.1} parent=47 // pred_fallthru
          _
      $region48: #{tpu_custom_call.1} parent=5 // pred_fallthru
        _
    $region6: #{tpu_custom_call.1} parent=1 // loop_footer
      %s20 = sadd.s32 1, %s16
    $region7: #{tpu_custom_call.1} parent=1 // loop_footer_branch
      %15 = sbr.rel target = $region3
    $region8: #{tpu_custom_call.1} parent=1 // loop_exit
      _
    %677 = vsyncpa [#allocation4], 1
    %s678 = scalar_lea.sflag [#allocation4], 1
    %679 = vsyncpa %s678, 1
    %680 = vsyncpa [#allocation5], 1
    %s681 = scalar_lea.sflag [#allocation5], 1
    %682 = vsyncpa %s681, 1

</llo_original>
